<compile_context>
chip_gen: v7x
topology: tpu7x:2x2x1
jax: 0.10.0
libtpu: 0.0.40
codegen_flags: <defaults>
</compile_context>

<pallas_src>
import jax
import jax.numpy as jnp
from jax.experimental import pallas as pl
from jax.experimental.pallas import tpu as pltpu

V_TH = 1.0
DECAY = 0.25
BN_EPS = 1e-5


def mlp_kernel(x_ref, w1_ref, b1_ref, w2_ref, b2_ref, o_ref, mem1, mem2):
    """One (token-tile, timestep) grid point.

    Grid = (num_token_tiles, T).  The T axis is the inner "arbitrary" axis, so
    the LIF membranes held in VMEM scratch carry across time for the token tile
    currently owned by this TensorCore and are re-initialised whenever a new
    token tile starts (t == 0).
    """
    @pl.when(pl.program_id(1) == 0)
    def _():
        mem1[...] = jnp.zeros_like(mem1)
        mem2[...] = jnp.zeros_like(mem2)

    x = x_ref[...]                                          # (C_in, tn) bf16

    # fc1_conv (1x1 conv == per-token matmul); fc1_bn scale folded into w1.
    h = jnp.dot(w1_ref[...], x, preferred_element_type=jnp.float32)
    h = h + b1_ref[...]                                     # (C_hid, 1) bcast, once per step

    # fc1_lif (hard reset)
    m1 = mem1[...] * DECAY + h
    fire1 = m1 > V_TH
    mem1[...] = jnp.where(fire1, 0.0, m1)
    sp1 = fire1.astype(jnp.bfloat16)                        # spikes exact in bf16

    # fc2_conv with fc2_bn scale folded into w2.
    y = jnp.dot(w2_ref[...], sp1, preferred_element_type=jnp.float32)
    y = y + b2_ref[...]                                     # (C_out, 1) bcast

    # fc2_lif (hard reset)
    # TODO(synk): if v5e vst-slot-bound, membranes could be kept in bf16 to
    #   halve the scratch store traffic (small numerics change).
    m2 = mem2[...] * DECAY + y
    fire2 = m2 > V_TH
    mem2[...] = jnp.where(fire2, 0.0, m2)
    o_ref[...] = fire2.astype(o_ref.dtype)


def _round_up(x, m):
    return ((x + m - 1) // m) * m


def _sublane(dtype):
    # sublane tile height per dtype packing: f32 -> 8, bf16 -> 16, int8 -> 32
    return {4: 8, 2: 16, 1: 32}[jnp.dtype(dtype).itemsize]


def _vmem_budget_bytes():
    """Per-generation scoped-VMEM ceiling: ~3/4 of physical VMEM
    (128 MiB -> 96 MiB on v5e/v6e, 64 MiB -> 48 MiB on v7x)."""
    cap = None
    try:
        info = pltpu.get_tpu_info()
        for attr in ("vmem_capacity_bytes", "vmem_size_bytes", "vmem_bytes"):
            v = getattr(info, attr, None)
            if v:
                cap = int(v)
                break
    except Exception:
        cap = None
    if not cap:
        cap = 64 << 20              # conservative fallback: v7x per-TC VMEM
    return (cap * 3) // 4


def _vmem_usage_bytes(tn, c_in, c_hid, c_out, spike_dtype):
    """Conservative VMEM estimate for the kernel at tile width tn, including
    layout padding (lane dim -> 128, sublane dim -> dtype tile)."""
    sd = jnp.dtype(spike_dtype)
    # Pipelined, t-varying blocks: double-buffered.
    x_blk = 2 * 2 * _round_up(c_in, _sublane(jnp.bfloat16)) * tn
    o_blk = 2 * sd.itemsize * _round_up(c_out, _sublane(sd)) * tn
    # Grid-invariant operands: DMA'd once, but still allocated x2 by the pipeline.
    w = 2 * 2 * (_round_up(c_hid, _sublane(jnp.bfloat16)) * _round_up(c_in, 128)
                 + _round_up(c_out, _sublane(jnp.bfloat16)) * _round_up(c_hid, 128))
    b = 2 * 4 * (_round_up(c_hid, 8) + _round_up(c_out, 8)) * 128   # (C,1) pads to (C,128)
    # LIF membrane scratch (f32, persistent across the whole grid).
    mem = 4 * (_round_up(c_hid, 8) + _round_up(c_out, 8)) * tn
    return x_blk + o_blk + w + b + mem


def _pick_tile_n(n, c_in, c_hid, c_out, spike_dtype, budget, min_steps=8):
    """Largest multiple-of-128 divisor of n that (a) fits the VMEM budget and
    (b) leaves >= min_steps token-tile grid steps (>= 4 per v7x TensorCore)
    whenever n is large enough, so input/output DMA overlaps compute."""
    if n % 128 != 0:
        # TODO(synk): non-128-multiple N falls back to a single masked tile
        # (vst.msk partial stores) -- correct but a known perf cliff.
        return n
    steps = max(1, min(min_steps, n // 128))
    cap = n // steps
    headroom = 2 << 20
    t = (cap // 128) * 128
    while t >= 128:
        if n % t == 0 and _vmem_usage_bytes(t, c_in, c_hid, c_out,
                                            spike_dtype) + headroom <= budget:
            return t
        t -= 128
    return 128


def spikformer_mlp(x, params, *, spike_dtype=jnp.bfloat16):
    """x: (T, B, C_in, H, W) float32 -> (T, B, C_out, H, W) spikes in {0,1}.

    spike_dtype=jnp.int8 halves output HBM writeback if downstream tolerates it.
    """
    T, B, C_in, H, W = x.shape
    w1, b1, w2, b2 = params
    C_hid = w1.shape[0]
    C_out = w2.shape[0]
    N = B * H * W

    budget = _vmem_budget_bytes()
    tn = _pick_tile_n(N, C_in, C_hid, C_out, spike_dtype, budget)
    assert N % tn == 0

    # NCHW -> lane-dense token layout (T, C, N); bf16 MXU operands (f32 accum).
    x_tok = jnp.transpose(x, (0, 2, 1, 3, 4)).reshape(T, C_in, N)
    x_tok = x_tok.astype(jnp.bfloat16)

    # Token tiles (parallel, megacore-sharded) x time (arbitrary, innermost so
    # the membrane scratch carries state across timesteps of each tile).
    grid = (N // tn, T)

    out_tok = pl.pallas_call(
        mlp_kernel,
        out_shape=jax.ShapeDtypeStruct((T, C_out, N), spike_dtype),
        grid_spec=pltpu.PrefetchScalarGridSpec(
            num_scalar_prefetch=0,
            grid=grid,
            in_specs=[
                pl.BlockSpec((None, C_in, tn), lambda i, t: (t, 0, i)),
                pl.BlockSpec((C_hid, C_in), lambda i, t: (0, 0)),
                pl.BlockSpec((C_hid, 1), lambda i, t: (0, 0)),
                pl.BlockSpec((C_out, C_hid), lambda i, t: (0, 0)),
                pl.BlockSpec((C_out, 1), lambda i, t: (0, 0)),
            ],
            out_specs=pl.BlockSpec((None, C_out, tn), lambda i, t: (t, 0, i)),
            scratch_shapes=[
                pltpu.VMEM((C_hid, tn), jnp.float32),   # fc1_lif membrane
                pltpu.VMEM((C_out, tn), jnp.float32),   # fc2_lif membrane
            ],
        ),
        compiler_params=pltpu.CompilerParams(
            dimension_semantics=("parallel", "arbitrary"),
            vmem_limit_bytes=int(budget)),
    )(x_tok, w1, b1, w2, b2)

    # (T, C_out, N) -> (T, B, C_out, H, W).  Spike values are exactly {0,1}.
    out = out_tok.reshape(T, C_out, B, H, W)
    return jnp.transpose(out, (0, 2, 1, 3, 4))


def make_params(key, c_in, c_hid, c_out):
    """Deterministic synthetic Conv2d(1x1) + eval-mode BatchNorm2d params.
    BN scale is folded into the weights (bf16); conv bias + BN shift -> b."""
    ks = jax.random.split(key, 12)

    def conv_bn(keys, cin, cout):
        kw, kb, kg, kbeta, km, kv = keys
        w = jax.random.normal(kw, (cout, cin), jnp.float32) / jnp.sqrt(cin)
        b = 0.1 * jax.random.normal(kb, (cout,), jnp.float32)
        gamma = 1.0 + 0.1 * jax.random.normal(kg, (cout,), jnp.float32)
        beta = 0.1 * jax.random.normal(kbeta, (cout,), jnp.float32)
        mean = 0.1 * jax.random.normal(km, (cout,), jnp.float32)
        var = jax.random.uniform(kv, (cout,), jnp.float32, minval=0.5, maxval=1.5)
        scale = gamma / jnp.sqrt(var + BN_EPS)
        w_folded = (w * scale[:, None]).astype(jnp.bfloat16)     # BN scale into weights
        shift = ((b - mean) * scale + beta).reshape(cout, 1)     # conv bias into shift
        return w_folded, shift

    w1, b1 = conv_bn(ks[0:6], c_in, c_hid)
    w2, b2 = conv_bn(ks[6:12], c_hid, c_out)
    return (w1, b1, w2, b2)


if __name__ == "__main__":
    T, B, C, H, W = 2, 2, 16, 16, 16    # in_features = 16, N = B*H*W = 512
    C_hid, C_out = 32, C                # hidden_features=32, out_features=in_features

    key = jax.random.PRNGKey(0)
    kx, kp = jax.random.split(key)
    x = jax.random.normal(kx, (T, B, C, H, W), jnp.float32)
    params = make_params(kp, C, C_hid, C_out)

    out = spikformer_mlp(x, params)
    out = jax.block_until_ready(out)

    assert out.shape == (T, B, C_out, H, W)
    assert bool(jnp.all((out == 0.0) | (out == 1.0)))   # LIF outputs are binary spikes
    print("KERNEL_OK")
</pallas_src>

<mosaic_0001>
module attributes {stable_mosaic.version = 11 : i64} {
  func.func @mlp_kernel(%arg0: i32, %arg1: i32, %arg2: memref<1x16x128xbf16, #tpu.memory_space<vmem>>, %arg3: memref<32x16xbf16, #tpu.memory_space<vmem>>, %arg4: memref<32x1xf32, #tpu.memory_space<vmem>>, %arg5: memref<16x32xbf16, #tpu.memory_space<vmem>>, %arg6: memref<16x1xf32, #tpu.memory_space<vmem>>, %arg7: memref<1x16x128xbf16, #tpu.memory_space<vmem>>, %arg8: memref<32x128xf32, #tpu.memory_space<vmem>>, %arg9: memref<16x128xf32, #tpu.memory_space<vmem>>) attributes {dimension_semantics = [#tpu.dimension_semantics<parallel>, #tpu.dimension_semantics<arbitrary>], iteration_bounds = array<i64: 4, 2>, scalar_prefetch = 0 : i64, scratch_operands = 2 : i64, tpu.core_type = #tpu.core_type<tc>, window_params = [{transform_indices = @transform_0, window_bounds = array<i64: 1, 16, 128>}, {pipeline_mode = #tpu.pipeline_mode<synchronous>, transform_indices = @transform_1, window_bounds = array<i64: 32, 16>}, {pipeline_mode = #tpu.pipeline_mode<synchronous>, transform_indices = @transform_2, window_bounds = array<i64: 32, 1>}, {pipeline_mode = #tpu.pipeline_mode<synchronous>, transform_indices = @transform_3, window_bounds = array<i64: 16, 32>}, {pipeline_mode = #tpu.pipeline_mode<synchronous>, transform_indices = @transform_4, window_bounds = array<i64: 16, 1>}, {transform_indices = @transform_5, window_bounds = array<i64: 1, 16, 128>}]} {
    %c0_i32 = arith.constant 0 : i32
    %0 = arith.cmpi eq, %arg1, %c0_i32 : i32
    %1 = arith.extui %0 : i1 to i32
    %c0_i32_0 = arith.constant 0 : i32
    %2 = arith.cmpi ne, %1, %c0_i32_0 : i32
    scf.if %2 {
      %cst_29 = arith.constant 0.000000e+00 : f32
      %42 = vector.broadcast %cst_29 : f32 to vector<32x128xf32>
      %c0_30 = arith.constant 0 : index
      %c0_31 = arith.constant 0 : index
      %43 = vector.load %arg8[%c0_30, %c0_31] : memref<32x128xf32, #tpu.memory_space<vmem>>, vector<32x128xf32>
      tpu.vector_store %arg8[%c0_30, %c0_31], %42 {strides = array<i32>} : memref<32x128xf32, #tpu.memory_space<vmem>>, vector<32x128xf32>,
      %cst_32 = arith.constant 0.000000e+00 : f32
      %44 = vector.broadcast %cst_32 : f32 to vector<16x128xf32>
      %c0_33 = arith.constant 0 : index
      %c0_34 = arith.constant 0 : index
      %45 = vector.load %arg9[%c0_33, %c0_34] : memref<16x128xf32, #tpu.memory_space<vmem>>, vector<16x128xf32>
      tpu.vector_store %arg9[%c0_33, %c0_34], %44 {strides = array<i32>} : memref<16x128xf32, #tpu.memory_space<vmem>>, vector<16x128xf32>,
    } else {
    }
    %c0 = arith.constant 0 : index
    %c0_1 = arith.constant 0 : index
    %c0_2 = arith.constant 0 : index
    %3 = vector.load %arg2[%c0, %c0_1, %c0_2] : memref<1x16x128xbf16, #tpu.memory_space<vmem>>, vector<1x16x128xbf16>
    %4 = vector.shape_cast %3 : vector<1x16x128xbf16> to vector<16x128xbf16>
    %c0_3 = arith.constant 0 : index
    %c0_4 = arith.constant 0 : index
    %5 = vector.load %arg3[%c0_3, %c0_4] : memref<32x16xbf16, #tpu.memory_space<vmem>>, vector<32x16xbf16>
    %cst = arith.constant dense<0.000000e+00> : vector<32x128xf32>
    %6 = tpu.matmul %5, %4, %cst {dimension_numbers = #tpu.dot_dimension_numbers<[1], [0], [0], [1], [0, 0, 1, 1], [], []>} : vector<32x16xbf16>, vector<16x128xbf16>, vector<32x128xf32> -> vector<32x128xf32>
    %c0_5 = arith.constant 0 : index
    %c0_6 = arith.constant 0 : index
    %7 = vector.load %arg4[%c0_5, %c0_6] : memref<32x1xf32, #tpu.memory_space<vmem>>, vector<32x1xf32>
    %8 = vector.broadcast %7 : vector<32x1xf32> to vector<32x128xf32>
    %9 = arith.addf %6, %8 : vector<32x128xf32>
    %c0_7 = arith.constant 0 : index
    %c0_8 = arith.constant 0 : index
    %10 = vector.load %arg8[%c0_7, %c0_8] : memref<32x128xf32, #tpu.memory_space<vmem>>, vector<32x128xf32>
    %cst_9 = arith.constant 2.500000e-01 : f32
    %11 = vector.broadcast %cst_9 : f32 to vector<32x128xf32>
    %12 = arith.mulf %10, %11 : vector<32x128xf32>
    %13 = arith.addf %12, %9 : vector<32x128xf32>
    %cst_10 = arith.constant 1.000000e+00 : f32
    %14 = vector.broadcast %cst_10 : f32 to vector<32x128xf32>
    %15 = arith.cmpf ogt, %13, %14 : vector<32x128xf32>
    %cst_11 = arith.constant 0.000000e+00 : f32
    %16 = vector.broadcast %cst_11 : f32 to vector<32x128xf32>
    %17 = arith.select %15, %16, %13 : vector<32x128xi1>, vector<32x128xf32>
    %c0_12 = arith.constant 0 : index
    %c0_13 = arith.constant 0 : index
    %18 = vector.load %arg8[%c0_12, %c0_13] : memref<32x128xf32, #tpu.memory_space<vmem>>, vector<32x128xf32>
    tpu.vector_store %arg8[%c0_12, %c0_13], %17 {strides = array<i32>} : memref<32x128xf32, #tpu.memory_space<vmem>>, vector<32x128xf32>,
    %19 = arith.extui %15 : vector<32x128xi1> to vector<32x128xi32>
    %20 = arith.sitofp %19 : vector<32x128xi32> to vector<32x128xf32>
    %21 = arith.truncf %20 : vector<32x128xf32> to vector<32x128xbf16>
    %c0_14 = arith.constant 0 : index
    %c0_15 = arith.constant 0 : index
    %22 = vector.load %arg5[%c0_14, %c0_15] : memref<16x32xbf16, #tpu.memory_space<vmem>>, vector<16x32xbf16>
    %cst_16 = arith.constant dense<0.000000e+00> : vector<16x128xf32>
    %23 = tpu.matmul %22, %21, %cst_16 {dimension_numbers = #tpu.dot_dimension_numbers<[1], [0], [0], [1], [0, 0, 1, 1], [], []>} : vector<16x32xbf16>, vector<32x128xbf16>, vector<16x128xf32> -> vector<16x128xf32>
    %c0_17 = arith.constant 0 : index
    %c0_18 = arith.constant 0 : index
    %24 = vector.load %arg6[%c0_17, %c0_18] : memref<16x1xf32, #tpu.memory_space<vmem>>, vector<16x1xf32>
    %25 = vector.broadcast %24 : vector<16x1xf32> to vector<16x128xf32>
    %26 = arith.addf %23, %25 : vector<16x128xf32>
    %c0_19 = arith.constant 0 : index
    %c0_20 = arith.constant 0 : index
    %27 = vector.load %arg9[%c0_19, %c0_20] : memref<16x128xf32, #tpu.memory_space<vmem>>, vector<16x128xf32>
    %cst_21 = arith.constant 2.500000e-01 : f32
    %28 = vector.broadcast %cst_21 : f32 to vector<16x128xf32>
    %29 = arith.mulf %27, %28 : vector<16x128xf32>
    %30 = arith.addf %29, %26 : vector<16x128xf32>
    %cst_22 = arith.constant 1.000000e+00 : f32
    %31 = vector.broadcast %cst_22 : f32 to vector<16x128xf32>
    %32 = arith.cmpf ogt, %30, %31 : vector<16x128xf32>
    %cst_23 = arith.constant 0.000000e+00 : f32
    %33 = vector.broadcast %cst_23 : f32 to vector<16x128xf32>
    %34 = arith.select %32, %33, %30 : vector<16x128xi1>, vector<16x128xf32>
    %c0_24 = arith.constant 0 : index
    %c0_25 = arith.constant 0 : index
    %35 = vector.load %arg9[%c0_24, %c0_25] : memref<16x128xf32, #tpu.memory_space<vmem>>, vector<16x128xf32>
    tpu.vector_store %arg9[%c0_24, %c0_25], %34 {strides = array<i32>} : memref<16x128xf32, #tpu.memory_space<vmem>>, vector<16x128xf32>,
    %36 = arith.extui %32 : vector<16x128xi1> to vector<16x128xi32>
    %37 = arith.sitofp %36 : vector<16x128xi32> to vector<16x128xf32>
    %38 = arith.truncf %37 : vector<16x128xf32> to vector<16x128xbf16>
    %c0_26 = arith.constant 0 : index
    %c0_27 = arith.constant 0 : index
    %c0_28 = arith.constant 0 : index
    %39 = vector.load %arg7[%c0_26, %c0_27, %c0_28] : memref<1x16x128xbf16, #tpu.memory_space<vmem>>, vector<1x16x128xbf16>
    %40 = vector.shape_cast %39 : vector<1x16x128xbf16> to vector<16x128xbf16>
    %41 = vector.shape_cast %38 : vector<16x128xbf16> to vector<1x16x128xbf16>
    tpu.vector_store %arg7[%c0_26, %c0_27, %c0_28], %41 {strides = array<i32>} : memref<1x16x128xbf16, #tpu.memory_space<vmem>>, vector<1x16x128xbf16>,
    return
  }
  func.func @transform_0(%arg0: i32, %arg1: i32) -> (i32, i32, i32) {
    %c0_i32 = arith.constant 0 : i32
    %c0_i32_0 = arith.constant 0 : i32
    return %arg1, %c0_i32, %arg0 : i32, i32, i32
  }
  func.func @transform_1(%arg0: i32, %arg1: i32) -> (i32, i32) {
    %c0_i32 = arith.constant 0 : i32
    %c0_i32_0 = arith.constant 0 : i32
    %c0_i32_1 = arith.constant 0 : i32
    return %c0_i32, %c0_i32_0 : i32, i32
  }
  func.func @transform_2(%arg0: i32, %arg1: i32) -> (i32, i32) {
    %c0_i32 = arith.constant 0 : i32
    %c0_i32_0 = arith.constant 0 : i32
    %c0_i32_1 = arith.constant 0 : i32
    return %c0_i32, %c0_i32_0 : i32, i32
  }
  func.func @transform_3(%arg0: i32, %arg1: i32) -> (i32, i32) {
    %c0_i32 = arith.constant 0 : i32
    %c0_i32_0 = arith.constant 0 : i32
    %c0_i32_1 = arith.constant 0 : i32
    return %c0_i32, %c0_i32_0 : i32, i32
  }
  func.func @transform_4(%arg0: i32, %arg1: i32) -> (i32, i32) {
    %c0_i32 = arith.constant 0 : i32
    %c0_i32_0 = arith.constant 0 : i32
    %c0_i32_1 = arith.constant 0 : i32
    return %c0_i32, %c0_i32_0 : i32, i32
  }
  func.func @transform_5(%arg0: i32, %arg1: i32) -> (i32, i32, i32) {
    %c0_i32 = arith.constant 0 : i32
    %c0_i32_0 = arith.constant 0 : i32
    return %arg1, %c0_i32, %arg0 : i32, i32, i32
  }
}

</mosaic_0001>

<llo_original>
// kernel: tpu_custom_call.1
$region0: #{tpu_custom_call.1}
  #allocation0 [shape = 'u32[]', space=smem, size = 0x4, offset = 0x4, fixed_abs, tag = 'smem constant byte address 0x4 - core index']
  #allocation1 [shape = 'u32[144,128]{1,0:T(1,128)}', space=vmem, size = 0x12000, scoped, tag = 'internal scratch']
  #allocation2 [shape = 'f32[32,128]{1,0:T(8,128)}', space=vmem, size = 0x4000, scoped, tag = 'scratch operand']
  #allocation3 [shape = 'f32[16,128]{1,0:T(8,128)}', space=vmem, size = 0x2000, scoped, tag = 'scratch operand']
  %s0 = inlined_call_operand.vmem [shape: bf16[2,16,512], index: 0, kind: input, shape index: {}]
  %s1 = inlined_call_operand.vmem [shape: bf16[32,16], index: 1, kind: input, shape index: {}]
  %s2 = inlined_call_operand.vmem [shape: f32[32,1], index: 2, kind: input, shape index: {}]
  %s3 = inlined_call_operand.vmem [shape: bf16[16,32], index: 3, kind: input, shape index: {}]
  %s4 = inlined_call_operand.vmem [shape: f32[16,1], index: 4, kind: input, shape index: {}]
  %s5 = inlined_call_operand.hbm [shape: bf16[2,16,512], index: 5, kind: output, shape index: {}]
  %s6 = sld [smem:[#allocation0]]
  $region98: #{tpu_custom_call.1} parent=0
    _
  %s8 = ssub.s32 1, %s6
  %s9 = scalar_select 0, %s8, %s6
  $region1: #{tpu_custom_call.1} parent=0
    #allocation4 [shape = 'u8[8192]{0}', space=vmem, size = 0x2000, scoped, tag = 'input window, operand 0']
    #allocation5 [shape = 'u8[8192]{0}', space=vmem, size = 0x2000, scoped, tag = 'output window, operand 0']
    #allocation6 [shape = 's32[2]{0}', space=sflag, size = 0x8, scoped, tag = 'scoped memory for tpu_custom_call.1']
    %10 = vsyncpa [#allocation6], 0
    %s11 = scalar_lea.sflag [#allocation6], 1
    %12 = vsyncpa %s11, 0
    loop: start=0, step=1, limit=10
    $region2: #{tpu_custom_call.1} parent=1 // loop_pre_header
      _
    $region3: #{tpu_custom_call.1} parent=1 // loop_header
      %s14 = sphi 0, %s18
      %p15 = scmp.ge.s32.totalorder %s14, 10
      %s21 = sphi 0, %s33
      %s22 = sphi 0, %s29
      %s23 = sphi 0, %s21
      %s24 = sphi 0, %s22
      %s25 = sphi 0, %s23
      %s26 = sphi 0, %s24
      %s38 = sphi 0, %s40
      %s41 = sphi 0, %s38
      %s42 = sphi 0, %s41
      %s58 = sphi 0, %s42
      %s62 = sphi 0, %s62
      %s64 = sphi 0, %s62
      %s65 = sphi 0, %s64
      %s79 = sphi 0, %s65
      %s83 = sphi 0, %s83
      %s85 = sphi 0, %s83
      %s86 = sphi 0, %s85
      %s100 = sphi 0, %s86
      %s104 = sphi 0, %s104
      %s106 = sphi 0, %s104
      %s107 = sphi 0, %s106
      %s121 = sphi 0, %s107
      %s125 = sphi 0, %s125
      %s127 = sphi 0, %s125
      %s128 = sphi 0, %s127
      %s142 = sphi 0, %s128
      %s150 = sphi 0, %s152
      %s153 = sphi 0, %s150
      %s154 = sphi 0, %s153
      %s170 = sphi 0, %s154
    $region4: #{tpu_custom_call.1} parent=1 // loop_header_branch
      %17 = sbr.rel (%p15) target = $region8
    $region5: #{tpu_custom_call.1} parent=1 // loop_body
      %s19 = ssub.s32 %s14, 1
      %s20 = ssub.s32 %s14, 2
      %s27 = sadd.s32 1, %s22
      %p28 = scmp.ge.s32.totalorder %s27, 2
      %s29 = scalar_select %p28, 0, %s27
      %s30 = sadd.s32 1, %s21
      %s31 = scalar_select %p28, %s30, %s21
      %p32 = scmp.ge.s32.totalorder %s31, 4
      %s33 = scalar_select %p32, 0, %s31
      %s34 = ssub.s32 %s22, %s29
      %s35 = ssub.s32 %s21, %s33
      %s36 = sor.u32 %s34, %s35
      %p37 = scmp.eq.s32.totalorder %s36, 0
      %s39 = sadd.s32 %s38, 1
      %s40 = scalar_select %p37, %s38, %s39
      %p43 = pneg %p37
      %p44 = scmp.eq.s32.totalorder %s14, 7
      %p45 = por %p43, %p44
      %p46 = scmp.ne.s32.totalorder %s38, %s41
      %p47 = scmp.eq.s32.totalorder %s14, 0
      %p48 = por %p46, %p47
      %p49 = scmp.ne.s32.totalorder %s38, %s41
      %p50 = scmp.eq.s32.totalorder %s19, 7
      %p51 = por %p49, %p50
      %p52 = scmp.ne.s32.totalorder %s41, %s42
      %p53 = scmp.eq.s32.totalorder %s19, 0
      %p54 = por %p52, %p53
      %p55 = scmp.ne.s32.totalorder %s41, %s42
      %p56 = scmp.eq.s32.totalorder %s20, 7
      %p57 = por %p55, %p56
      %p59 = scmp.ne.s32.totalorder %s42, %s58
      %p60 = scmp.eq.s32.totalorder %s20, 0
      %p61 = por %p59, %p60
      %s63 = sadd.s32 %s62, 1
      %p66 = scmp.eq.s32.totalorder %s14, 7
      %p67 = scmp.ne.s32.totalorder %s62, %s64
      %p68 = scmp.eq.s32.totalorder %s14, 0
      %p69 = por %p67, %p68
      %p70 = scmp.ne.s32.totalorder %s62, %s64
      %p71 = scmp.eq.s32.totalorder %s19, 7
      %p72 = por %p70, %p71
      %p73 = scmp.ne.s32.totalorder %s64, %s65
      %p74 = scmp.eq.s32.totalorder %s19, 0
      %p75 = por %p73, %p74
      %p76 = scmp.ne.s32.totalorder %s64, %s65
      %p77 = scmp.eq.s32.totalorder %s20, 7
      %p78 = por %p76, %p77
      %p80 = scmp.ne.s32.totalorder %s65, %s79
      %p81 = scmp.eq.s32.totalorder %s20, 0
      %p82 = por %p80, %p81
      %s84 = sadd.s32 %s83, 1
      %p87 = scmp.eq.s32.totalorder %s14, 7
      %p88 = scmp.ne.s32.totalorder %s83, %s85
      %p89 = scmp.eq.s32.totalorder %s14, 0
      %p90 = por %p88, %p89
      %p91 = scmp.ne.s32.totalorder %s83, %s85
      %p92 = scmp.eq.s32.totalorder %s19, 7
      %p93 = por %p91, %p92
      %p94 = scmp.ne.s32.totalorder %s85, %s86
      %p95 = scmp.eq.s32.totalorder %s19, 0
      %p96 = por %p94, %p95
      %p97 = scmp.ne.s32.totalorder %s85, %s86
      %p98 = scmp.eq.s32.totalorder %s20, 7
      %p99 = por %p97, %p98
      %p101 = scmp.ne.s32.totalorder %s86, %s100
      %p102 = scmp.eq.s32.totalorder %s20, 0
      %p103 = por %p101, %p102
      %s105 = sadd.s32 %s104, 1
      %p108 = scmp.eq.s32.totalorder %s14, 7
      %p109 = scmp.ne.s32.totalorder %s104, %s106
      %p110 = scmp.eq.s32.totalorder %s14, 0
      %p111 = por %p109, %p110
      %p112 = scmp.ne.s32.totalorder %s104, %s106
      %p113 = scmp.eq.s32.totalorder %s19, 7
      %p114 = por %p112, %p113
      %p115 = scmp.ne.s32.totalorder %s106, %s107
      %p116 = scmp.eq.s32.totalorder %s19, 0
      %p117 = por %p115, %p116
      %p118 = scmp.ne.s32.totalorder %s106, %s107
      %p119 = scmp.eq.s32.totalorder %s20, 7
      %p120 = por %p118, %p119
      %p122 = scmp.ne.s32.totalorder %s107, %s121
      %p123 = scmp.eq.s32.totalorder %s20, 0
      %p124 = por %p122, %p123
      %s126 = sadd.s32 %s125, 1
      %p129 = scmp.eq.s32.totalorder %s14, 7
      %p130 = scmp.ne.s32.totalorder %s125, %s127
      %p131 = scmp.eq.s32.totalorder %s14, 0
      %p132 = por %p130, %p131
      %p133 = scmp.ne.s32.totalorder %s125, %s127
      %p134 = scmp.eq.s32.totalorder %s19, 7
      %p135 = por %p133, %p134
      %p136 = scmp.ne.s32.totalorder %s127, %s128
      %p137 = scmp.eq.s32.totalorder %s19, 0
      %p138 = por %p136, %p137
      %p139 = scmp.ne.s32.totalorder %s127, %s128
      %p140 = scmp.eq.s32.totalorder %s20, 7
      %p141 = por %p139, %p140
      %p143 = scmp.ne.s32.totalorder %s128, %s142
      %p144 = scmp.eq.s32.totalorder %s20, 0
      %p145 = por %p143, %p144
      %s146 = ssub.s32 %s22, %s29
      %s147 = ssub.s32 %s21, %s33
      %s148 = sor.u32 %s146, %s147
      %p149 = scmp.eq.s32.totalorder %s148, 0
      %s151 = sadd.s32 %s150, 1
      %s152 = scalar_select %p149, %s150, %s151
      %p155 = pneg %p149
      %p156 = scmp.eq.s32.totalorder %s14, 7
      %p157 = por %p155, %p156
      %p158 = scmp.ne.s32.totalorder %s150, %s153
      %p159 = scmp.eq.s32.totalorder %s14, 0
      %p160 = por %p158, %p159
      %p161 = scmp.ne.s32.totalorder %s150, %s153
      %p162 = scmp.eq.s32.totalorder %s19, 7
      %p163 = por %p161, %p162
      %p164 = scmp.ne.s32.totalorder %s153, %s154
      %p165 = scmp.eq.s32.totalorder %s19, 0
      %p166 = por %p164, %p165
      %p167 = scmp.ne.s32.totalorder %s153, %s154
      %p168 = scmp.eq.s32.totalorder %s20, 7
      %p169 = por %p167, %p168
      %p171 = scmp.ne.s32.totalorder %s154, %s170
      %p172 = scmp.eq.s32.totalorder %s20, 0
      %p173 = por %p171, %p172
      %p174 = scmp.le.s32.totalorder 1, %s14
      %p175 = scmp.lt.s32.totalorder %s14, 9
      %p176 = pnand %p174, %p175
      %p177 = pneg %p176
      // Predicated region
      $region9: #{tpu_custom_call.1} parent=5 // pred_check
        _
      $region10: #{tpu_custom_call.1} parent=5 // pred_check_branch
        %179 = sbr.rel (%p176) target = $region12
      $region11: #{tpu_custom_call.1} parent=5 // pred_region
        %s180 = ssub.s32 %s14, 1
        // Predicated region
        $region13: #{tpu_custom_call.1} parent=11 // pred_check
          %p181 = pneg %p75
        $region14: #{tpu_custom_call.1} parent=11 // pred_check_branch
          %183 = sbr.rel (%p181) target = $region16
        $region15: #{tpu_custom_call.1} parent=11 // pred_region
          _
        $region16: #{tpu_custom_call.1} parent=11 // pred_fallthru
          _
        // Predicated region
        $region17: #{tpu_custom_call.1} parent=11 // pred_check
          %p184 = pneg %p96
        $region18: #{tpu_custom_call.1} parent=11 // pred_check_branch
          %186 = sbr.rel (%p184) target = $region20
        $region19: #{tpu_custom_call.1} parent=11 // pred_region
          _
        $region20: #{tpu_custom_call.1} parent=11 // pred_fallthru
          _
        // Predicated region
        $region21: #{tpu_custom_call.1} parent=11 // pred_check
          %p187 = pneg %p117
        $region22: #{tpu_custom_call.1} parent=11 // pred_check_branch
          %189 = sbr.rel (%p187) target = $region24
        $region23: #{tpu_custom_call.1} parent=11 // pred_region
          _
        $region24: #{tpu_custom_call.1} parent=11 // pred_fallthru
          _
        // Predicated region
        $region25: #{tpu_custom_call.1} parent=11 // pred_check
          %p190 = pneg %p138
        $region26: #{tpu_custom_call.1} parent=11 // pred_check_branch
          %192 = sbr.rel (%p190) target = $region28
        $region27: #{tpu_custom_call.1} parent=11 // pred_region
          _
        $region28: #{tpu_custom_call.1} parent=11 // pred_fallthru
          _
      $region12: #{tpu_custom_call.1} parent=5 // pred_fallthru
        _
      %p193 = scmp.lt.s32.totalorder %s14, 8
      // Predicated region
      $region29: #{tpu_custom_call.1} parent=5 // pred_check
        %p194 = pneg %p193
      $region30: #{tpu_custom_call.1} parent=5 // pred_check_branch
        %196 = sbr.rel (%p194) target = $region32
      $region31: #{tpu_custom_call.1} parent=5 // pred_region
        // Predicated region
        $region33: #{tpu_custom_call.1} parent=31 // pred_check
          %p197 = pneg %p48
        $region34: #{tpu_custom_call.1} parent=31 // pred_check_branch
          %199 = sbr.rel (%p197) target = $region36
        $region35: #{tpu_custom_call.1} parent=31 // pred_region
          %s200 = sand.u32 %s38, 1
          %s201 = sand.u32 %s38, 1
          %s202 = smul.addr %s201, 8
          %s203 = scalar_lea.vmem [#allocation4], %s202
          %s204 = smul.addr %s22, 8
          %s205 = sadd.s32 %s21, %s204
          %s206 = smul.addr %s205, 4
          %s207 = scalar_lea.vmem %s0, %s206
          // Predicated region
          $region37: #{tpu_custom_call.1} parent=35 // pred_check
            _
          $region38: #{tpu_custom_call.1} parent=35 // pred_check_branch
            %209 = sbr.rel (0) target = $region40
          $region39: #{tpu_custom_call.1} parent=35 // pred_region
            // Predicated region
            $region41: #{tpu_custom_call.1} parent=39 // pred_check
              _
            $region42: #{tpu_custom_call.1} parent=39 // pred_check_branch
              %211 = sbr.rel target = $region44
            $region43: #{tpu_custom_call.1} parent=39 // pred_region
              // Predicated region
              $region56: #{tpu_custom_call.1} parent=43 // pred_check
                _
              $region57: #{tpu_custom_call.1} parent=43 // pred_check_branch
                %228 = sbr.rel (0) target = $region59
              $region58: #{tpu_custom_call.1} parent=43 // pred_region
                loop: start=0, step=1, limit=1
                $region60: #{tpu_custom_call.1} parent=58 // loop_pre_header
                  _
                $region61: #{tpu_custom_call.1} parent=58 // loop_header
                  %s230 = sphi 0, %s234
                  %p231 = scmp.ge.s32.totalorder %s230, 1
                  %s235 = sphi %s207, %s207
                  %s236 = sphi %s203, %s203
                $region62: #{tpu_custom_call.1} parent=58 // loop_header_branch
                  %233 = sbr.rel (%p231) target = $region66
                $region63: #{tpu_custom_call.1} parent=58 // loop_body
                  _
                $region64: #{tpu_custom_call.1} parent=58 // loop_footer
                  %s234 = sadd.s32 1, %s230
                $region65: #{tpu_custom_call.1} parent=58 // loop_footer_branch
                  %229 = sbr.rel target = $region61
                $region66: #{tpu_custom_call.1} parent=58 // loop_exit
                  _
                loop: start=0, step=1, limit=1
                $region67: #{tpu_custom_call.1} parent=58 // loop_pre_header
                  _
                $region68: #{tpu_custom_call.1} parent=58 // loop_header
                  %s239 = sphi 0, %s243
                  %p240 = scmp.ge.s32.totalorder %s239, 1
                  %s244 = sphi %s207, %s207
                  %s245 = sphi %s203, %s203
                $region69: #{tpu_custom_call.1} parent=58 // loop_header_branch
                  %242 = sbr.rel (%p240) target = $region73
                $region70: #{tpu_custom_call.1} parent=58 // loop_body
                  %v246 = vld [vmem:[%s244] sm:$0xf]
                  %247 = vst [vmem:[%s245] sm:$0xf] %v246
                  %v248 = vld [vmem:[%s244 + $0x10] sm:$0xf]
                  %249 = vst [vmem:[%s245 + $0x4] sm:$0xf] %v248
                $region71: #{tpu_custom_call.1} parent=58 // loop_footer
                  %s243 = sadd.s32 1, %s239
                $region72: #{tpu_custom_call.1} parent=58 // loop_footer_branch
                  %238 = sbr.rel target = $region68
                $region73: #{tpu_custom_call.1} parent=58 // loop_exit
                  _
              $region59: #{tpu_custom_call.1} parent=43 // pred_fallthru
                _
            $region44: #{tpu_custom_call.1} parent=39 // pred_fallthru
              _
            // Predicated region
            $region45: #{tpu_custom_call.1} parent=39 // pred_check
              _
            $region46: #{tpu_custom_call.1} parent=39 // pred_check_branch
              %213 = sbr.rel (0) target = $region48
            $region47: #{tpu_custom_call.1} parent=39 // pred_region
              loop: start=0, step=1, limit=1
              $region49: #{tpu_custom_call.1} parent=47 // loop_pre_header
                _
              $region50: #{tpu_custom_call.1} parent=47 // loop_header
                %s216 = sphi 0, %s220
                %p217 = scmp.ge.s32.totalorder %s216, 1
                %s221 = sphi %s207, %s207
                %s222 = sphi %s203, %s203
              $region51: #{tpu_custom_call.1} parent=47 // loop_header_branch
                %219 = sbr.rel (%p217) target = $region55
              $region52: #{tpu_custom_call.1} parent=47 // loop_body
                %v223 = vld [vmem:[%s221] sm:$0xf]
                %224 = vst [vmem:[%s222] sm:$0xf] %v223
                %v225 = vld [vmem:[%s221 + $0x10] sm:$0xf]
                %226 = vst [vmem:[%s222 + $0x4] sm:$0xf] %v225
              $region53: #{tpu_custom_call.1} parent=47 // loop_footer
                %s220 = sadd.s32 1, %s216
              $region54: #{tpu_custom_call.1} parent=47 // loop_footer_branch
                %215 = sbr.rel target = $region50
              $region55: #{tpu_custom_call.1} parent=47 // loop_exit
                _
            $region48: #{tpu_custom_call.1} parent=39 // pred_fallthru
              _
          $region40: #{tpu_custom_call.1} parent=35 // pred_fallthru
            _
          %250 = vnop
        $region36: #{tpu_custom_call.1} parent=31 // pred_fallthru
          _
      $region32: #{tpu_custom_call.1} parent=5 // pred_fallthru
        _
      %p251 = scmp.le.s32.totalorder 1, %s14
      %p252 = scmp.lt.s32.totalorder %s14, 9
      %p253 = pnand %p251, %p252
      %p254 = pneg %p253
      // Predicated region
      $region74: #{tpu_custom_call.1} parent=5 // pred_check
        _
      $region75: #{tpu_custom_call.1} parent=5 // pred_check_branch
        %256 = sbr.rel (%p253) target = $region77
      $region76: #{tpu_custom_call.1} parent=5 // pred_region
        %s257 = ssub.s32 %s14, 1
        %s258 = sand.u32 %s41, 1
        %s259 = sand.u32 %s41, 1
        %s260 = smul.addr %s259, 8
        %s261 = scalar_lea.vmem [#allocation4], %s260
        // Predicated region
        $region78: #{tpu_custom_call.1} parent=76 // pred_check
          %p262 = pneg %p54
        $region79: #{tpu_custom_call.1} parent=76 // pred_check_branch
          %264 = sbr.rel (%p262) target = $region81
        $region80: #{tpu_custom_call.1} parent=76 // pred_region
          _
        $region81: #{tpu_custom_call.1} parent=76 // pred_fallthru
          _
        %s265 = sand.u32 %s41, 1
        %s266 = sand.u32 %s41, 1
        %s267 = smul.addr %s266, 8
        %s268 = scalar_lea.vmem [#allocation4], %s267
        %p269 = pneg %p54
        %p270 = pneg %p51
        %p271 = pneg %p75
        %p272 = pneg %p72
        %p273 = pneg %p96
        %p274 = pneg %p93
        %p275 = pneg %p117
        %p276 = pneg %p114
        %p277 = pneg %p138
        %p278 = pneg %p135
        %p279 = pneg %p166
        %p280 = pneg %p163
        %s281 = sand.u32 %s153, 1
        %s282 = scalar_lea.sflag [#allocation6], %s281
        %s283 = sand.u32 %s153, 1
        %s284 = smul.addr %s283, 8
        %s285 = scalar_lea.vmem [#allocation5], %s284
        %p287 = scmp.eq.s32.totalorder %s24, 0
        // Predicated region
        $region82: #{tpu_custom_call.1} parent=76 // pred_check
          %p288 = pneg %p287
        $region83: #{tpu_custom_call.1} parent=76 // pred_check_branch
          %290 = sbr.rel (%p288) target = $region85
        $region84: #{tpu_custom_call.1} parent=76 // pred_region
          %291 = vst [vmem:[#allocation2] sm:$0xff] 0.0
          %292 = vst [vmem:[#allocation2 + $0x8] sm:$0xff] 0.0
          %293 = vst [vmem:[#allocation2 + $0x10] sm:$0xff] 0.0
          %294 = vst [vmem:[#allocation2 + $0x18] sm:$0xff] 0.0
          %295 = vst [vmem:[#allocation3] sm:$0xff] 0.0
          %296 = vst [vmem:[#allocation3 + $0x8] sm:$0xff] 0.0
        $region85: #{tpu_custom_call.1} parent=76 // pred_fallthru
          _
        %v297 = vld [vmem:[%s261] sm:$0xf]
        %v298 = vld [vmem:[%s261 + $0x4] sm:$0xf]
        %v299 = vld [vmem:[%s1] sm:$0xf]
        %v300 = vld [vmem:[%s1 + $0x4] sm:$0xf]
        %v301 = vld [vmem:[%s1 + $0x8] sm:$0xf]
        %v302 = vld [vmem:[%s1 + $0xc] sm:$0xf]
        %v303 = vld [vmem:[%s2] sm:$0xff]
        %v304 = vld [vmem:[%s2 + $0x8] sm:$0xff]
        %v305 = vld [vmem:[%s2 + $0x10] sm:$0xff]
        %v306 = vld [vmem:[%s2 + $0x18] sm:$0xff]
        %308 = vset.pattern.permute.xlu0 0
        %309 = vperm.xlu0 %308, %v303
        %v310 = vpop.permute.xlu0 %309
        %313 = vset.pattern.permute.xlu0 0
        %314 = vperm.xlu0 %313, %v304
        %v315 = vpop.permute.xlu0 %314
        %318 = vset.pattern.permute.xlu0 0
        %319 = vperm.xlu0 %318, %v305
        %v320 = vpop.permute.xlu0 %319
        %323 = vset.pattern.permute.xlu0 0
        %324 = vperm.xlu0 %323, %v306
        %v325 = vpop.permute.xlu0 %324
        %v331 = vunpack.c.l.b16 %v299
        %v332 = vunpack.c.l.b16 %v300
        %v333 = vunpack.c.l.b16 %v301
        %v334 = vunpack.c.l.b16 %v302
        %v335 = vpack.c.b16 %v332, %v331
        %v336 = vpack.c.b16 %v334, %v333
        %v339 = vunpack.c.l.b16 %v297
        %v340 = vunpack.c.l.b16 %v298
        %v341 = vpack.c.b16 %v340, %v339
        %vm343 = vcmask 130048
        %v345 = vsel %vm343, %v335, 0
        %v348 = vsel %vm343, %v336, 0
        %350 = vmatprep.subr.bf16.mxu0 0
        %351 = vmatpush1.bf16.msra.mxu0 %v341
        %352 = vmatprep.subr.bf16.mxu0 0
        %353 = vmatpush1.bf16.msra.mxu0 0
        %354 = vmatprep.subr.bf16.mxu0 0
        %355 = vmatpush1.bf16.msra.mxu0 0
        %356 = vmatprep.subr.bf16.mxu0 0
        %357 = vmatpush1.bf16.msra.mxu0 0
        %358 = vmatprep.subr.bf16.mxu0 0
        %359 = vmatpush1.bf16.msra.mxu0 0
        %360 = vmatprep.subr.bf16.mxu0 0
        %361 = vmatpush1.bf16.msra.mxu0 0
        %362 = vmatprep.subr.bf16.mxu0 0
        %363 = vmatpush1.bf16.msra.mxu0 0
        %364 = vmatprep.subr.bf16.mxu0 0
        %365 = vmatpush1.bf16.msra.mxu0 0
        %366 = vmatprep.subr.bf16.mxu0 0
        %367 = vmatpush1.bf16.msra.mxu0 0
        %368 = vmatprep.subr.bf16.mxu0 0
        %369 = vmatpush1.bf16.msra.mxu0 0
        %370 = vmatprep.subr.bf16.mxu0 0
        %371 = vmatpush1.bf16.msra.mxu0 0
        %372 = vmatprep.subr.bf16.mxu0 0
        %373 = vmatpush1.bf16.msra.mxu0 0
        %374 = vmatprep.subr.bf16.mxu0 0
        %375 = vmatpush1.bf16.msra.mxu0 0
        %376 = vmatprep.subr.bf16.mxu0 0
        %377 = vmatpush1.bf16.msra.mxu0 0
        %378 = vmatprep.subr.bf16.mxu0 0
        %379 = vmatpush1.bf16.msra.mxu0 0
        %380 = vmatprep.subr.bf16.mxu0 0
        %381 = vmatpush1.bf16.msra.mxu0 0
        %382 = vmatprep.mubr.bf16.mxu0 0
        %383 = vmatmul.mubr.bf16.gmra.mrb[0].mxu0 %v345
        %v384 = vpop.f32.mrb[0].mxu0
        %v385 = vadd.f32 %v310, %v384
        %v386 = vpop.f32.mrb[0].mxu0
        %v387 = vpop.f32.mrb[0].mxu0
        %v388 = vadd.f32 %v315, %v387
        %v389 = vpop.f32.mrb[0].mxu0
        %390 = vmatprep.mubr.bf16.mxu0 0
        %391 = vmatmul.mubr.bf16.gmra.mrb[0].mxu0 %v348
        %v392 = vpop.f32.mrb[0].mxu0
        %v393 = vadd.f32 %v320, %v392
        %v394 = vpop.f32.mrb[0].mxu0
        %v395 = vpop.f32.mrb[0].mxu0
        %v396 = vadd.f32 %v325, %v395
        %v397 = vpop.f32.mrb[0].mxu0
        %398 = vdwg.mxu0
        %v399 = vld [vmem:[#allocation2] sm:$0xff]
        %v400 = vld [vmem:[#allocation2 + $0x8] sm:$0xff]
        %v401 = vld [vmem:[#allocation2 + $0x10] sm:$0xff]
        %v402 = vld [vmem:[#allocation2 + $0x18] sm:$0xff]
        %v403 = vmul.f32 %v399, 0.25
        %v404 = vmul.f32 %v400, 0.25
        %v405 = vmul.f32 %v401, 0.25
        %v406 = vmul.f32 %v402, 0.25
        %v407 = vadd.f32 %v403, %v385
        %v408 = vadd.f32 %v404, %v388
        %v409 = vadd.f32 %v405, %v393
        %v410 = vadd.f32 %v406, %v396
        %vm411 = vcmp.gt.f32.partialorder %v407, 1.0
        %vm412 = vcmp.gt.f32.partialorder %v408, 1.0
        %vm413 = vcmp.gt.f32.partialorder %v409, 1.0
        %vm414 = vcmp.gt.f32.partialorder %v410, 1.0
        %v415 = vsel %vm411, 0.0, %v407
        %v416 = vsel %vm412, 0.0, %v408
        %v417 = vsel %vm413, 0.0, %v409
        %v418 = vsel %vm414, 0.0, %v410
        %419 = vst [vmem:[#allocation2] sm:$0xff] %v415
        %420 = vst [vmem:[#allocation2 + $0x8] sm:$0xff] %v416
        %421 = vst [vmem:[#allocation2 + $0x10] sm:$0xff] %v417
        %422 = vst [vmem:[#allocation2 + $0x18] sm:$0xff] %v418
        %v423 = vsel %vm411, 1, 0
        %v424 = vsel %vm412, 1, 0
        %v425 = vsel %vm413, 1, 0
        %v426 = vsel %vm414, 1, 0
        %v427 = vcvt.s32.f32 %v423
        %v428 = vcvt.s32.f32 %v424
        %v429 = vcvt.s32.f32 %v425
        %v430 = vcvt.s32.f32 %v426
        %v431 = vpack.c.bf16 %v428, %v427
        %v432 = vpack.c.bf16 %v430, %v429
        %v433 = vld [vmem:[%s3] sm:$0xf]
        %v434 = vld [vmem:[%s3 + $0x4] sm:$0xf]
        %v435 = vld [vmem:[%s4] sm:$0xff]
        %v436 = vld [vmem:[%s4 + $0x8] sm:$0xff]
        %438 = vset.pattern.permute.xlu0 0
        %439 = vperm.xlu0 %438, %v435
        %v440 = vpop.permute.xlu0 %439
        %443 = vset.pattern.permute.xlu0 0
        %444 = vperm.xlu0 %443, %v436
        %v445 = vpop.permute.xlu0 %444
        %v449 = vunpack.c.l.b16 %v433
        %v450 = vunpack.c.l.b16 %v434
        %v451 = vpack.c.b16 %v450, %v449
        %vm452 = vcmask 261120
        %v454 = vsel %vm452, %v451, 0
        %456 = vmatprep.subr.bf16.mxu0 0
        %457 = vmatpush1.bf16.msra.mxu0 %v431
        %458 = vmatprep.subr.bf16.mxu0 0
        %459 = vmatpush1.bf16.msra.mxu0 %v432
        %460 = vmatprep.subr.bf16.mxu0 0
        %461 = vmatpush1.bf16.msra.mxu0 0
        %462 = vmatprep.subr.bf16.mxu0 0
        %463 = vmatpush1.bf16.msra.mxu0 0
        %464 = vmatprep.subr.bf16.mxu0 0
        %465 = vmatpush1.bf16.msra.mxu0 0
        %466 = vmatprep.subr.bf16.mxu0 0
        %467 = vmatpush1.bf16.msra.mxu0 0
        %468 = vmatprep.subr.bf16.mxu0 0
        %469 = vmatpush1.bf16.msra.mxu0 0
        %470 = vmatprep.subr.bf16.mxu0 0
        %471 = vmatpush1.bf16.msra.mxu0 0
        %472 = vmatprep.subr.bf16.mxu0 0
        %473 = vmatpush1.bf16.msra.mxu0 0
        %474 = vmatprep.subr.bf16.mxu0 0
        %475 = vmatpush1.bf16.msra.mxu0 0
        %476 = vmatprep.subr.bf16.mxu0 0
        %477 = vmatpush1.bf16.msra.mxu0 0
        %478 = vmatprep.subr.bf16.mxu0 0
        %479 = vmatpush1.bf16.msra.mxu0 0
        %480 = vmatprep.subr.bf16.mxu0 0
        %481 = vmatpush1.bf16.msra.mxu0 0
        %482 = vmatprep.subr.bf16.mxu0 0
        %483 = vmatpush1.bf16.msra.mxu0 0
        %484 = vmatprep.subr.bf16.mxu0 0
        %485 = vmatpush1.bf16.msra.mxu0 0
        %486 = vmatprep.subr.bf16.mxu0 0
        %487 = vmatpush1.bf16.msra.mxu0 0
        %488 = vmatprep.mubr.bf16.mxu0 0
        %489 = vmatmul.mubr.bf16.gmra.mrb[0].mxu0 %v454
        %v490 = vpop.f32.mrb[0].mxu0
        %v491 = vadd.f32 %v440, %v490
        %v492 = vpop.f32.mrb[0].mxu0
        %v493 = vpop.f32.mrb[0].mxu0
        %v494 = vadd.f32 %v445, %v493
        %v495 = vpop.f32.mrb[0].mxu0
        %496 = vdwg.mxu0
        %v497 = vld [vmem:[#allocation3] sm:$0xff]
        %v498 = vld [vmem:[#allocation3 + $0x8] sm:$0xff]
        %v499 = vmul.f32 %v497, 0.25
        %v500 = vmul.f32 %v498, 0.25
        %v501 = vadd.f32 %v499, %v491
        %v502 = vadd.f32 %v500, %v494
        %vm503 = vcmp.gt.f32.partialorder %v501, 1.0
        %vm504 = vcmp.gt.f32.partialorder %v502, 1.0
        %v505 = vsel %vm503, 0.0, %v501
        %v506 = vsel %vm504, 0.0, %v502
        %507 = vst [vmem:[#allocation3] sm:$0xff] %v505
        %508 = vst [vmem:[#allocation3 + $0x8] sm:$0xff] %v506
        %v509 = vsel %vm503, 1, 0
        %v510 = vsel %vm504, 1, 0
        %v511 = vcvt.s32.f32 %v509
        %v512 = vcvt.s32.f32 %v510
        %v513 = vpack.c.bf16 %v512, %v511
        %v515 = vunpack.c.l.b16 %v513
        %v516 = vunpack.c.h.b16 %v513
        %v517 = vpack.c.b16 %v515, %v515
        %v518 = vpack.c.b16 %v516, %v516
        %521 = vst [vmem:[%s285] sm:$0xf] %v517
        %522 = vst [vmem:[%s285 + $0x4] sm:$0xf] %v518
        %s523 = sand.u32 %s153, 1
        %s524 = scalar_lea.sflag [#allocation6], %s523
        %s525 = sand.u32 %s153, 1
        %s526 = smul.addr %s525, 8
        %s527 = scalar_lea.vmem [#allocation5], %s526
        // Predicated region
        $region86: #{tpu_custom_call.1} parent=76 // pred_check
          %p528 = pneg %p163
        $region87: #{tpu_custom_call.1} parent=76 // pred_check_branch
          %530 = sbr.rel (%p528) target = $region89
        $region88: #{tpu_custom_call.1} parent=76 // pred_region
          %s532 = ssub.s32 128, 128
          %533 = vsyncadd %s524, %s532
          %s534 = smul.addr %s24, 8
          %s535 = sadd.s32 %s23, %s534
          %s536 = smul.addr %s535, 64
          %s537 = scalar_lea.hbm %s5, %s536
          %s538 = sshll.u32 %s527, 4
          %s539 = int_to_ptr.vmem [resolvable:$true] %s538
          %544 = dma.vmem_to_hbm [thread:$0]  %s539, 128, %s537, %s524, 64, 256, 4
        $region89: #{tpu_custom_call.1} parent=76 // pred_fallthru
          _
      $region77: #{tpu_custom_call.1} parent=5 // pred_fallthru
        _
      %p545 = scmp.le.s32.totalorder 2, %s14
      // Predicated region
      $region90: #{tpu_custom_call.1} parent=5 // pred_check
        %p546 = pneg %p545
      $region91: #{tpu_custom_call.1} parent=5 // pred_check_branch
        %548 = sbr.rel (%p546) target = $region93
      $region92: #{tpu_custom_call.1} parent=5 // pred_region
        %s549 = ssub.s32 %s14, 2
        // Predicated region
        $region94: #{tpu_custom_call.1} parent=92 // pred_check
          %p550 = pneg %p169
        $region95: #{tpu_custom_call.1} parent=92 // pred_check_branch
          %552 = sbr.rel (%p550) target = $region97
        $region96: #{tpu_custom_call.1} parent=92 // pred_region
          %s553 = sand.u32 %s154, 1
          %s554 = scalar_lea.sflag [#allocation6], %s553
          %s555 = sand.u32 %s154, 1
          %s556 = smul.addr %s555, 8
          %s557 = scalar_lea.vmem [#allocation5], %s556
          %558 = dma.done %s554, 128
        $region97: #{tpu_custom_call.1} parent=92 // pred_fallthru
          _
      $region93: #{tpu_custom_call.1} parent=5 // pred_fallthru
        _
    $region6: #{tpu_custom_call.1} parent=1 // loop_footer
      %s18 = sadd.s32 1, %s14
    $region7: #{tpu_custom_call.1} parent=1 // loop_footer_branch
      %13 = sbr.rel target = $region3
    $region8: #{tpu_custom_call.1} parent=1 // loop_exit
      _
    %559 = vsyncpa [#allocation6], 1
    %s560 = scalar_lea.sflag [#allocation6], 1
    %561 = vsyncpa %s560, 1

</llo_original>
